<compile_context>
chip_gen: v5e
topology: v5e:2x2
jax: 0.10.0
libtpu: 0.0.40
codegen_flags: <defaults>
</compile_context>

<pallas_src>
import functools

import jax
import jax.numpy as jnp
from jax.experimental import pallas as pl
from jax.experimental.pallas import tpu as pltpu


# VMEM budgeting: keep the double-buffered working set comfortably inside the
# smallest-physical-VMEM generation (v7x: 64 MiB) while raising the scoped
# limit above the conservative defaults (16 MiB v5e / 32 MiB v6e, v7x).
_VMEM_LIMIT_BYTES = 48 * 1024 * 1024
_BLOCK_BUDGET_BYTES = 6 * 1024 * 1024   # per input block, per pipeline buffer
_MAX_ROW_BLOCK = 512                    # ~85% of HBM roofline; bigger is marginal


def _largest_divisor_block(n, mult, cap):
    """Largest d <= cap with d % mult == 0 and n % d == 0; falls back to n."""
    cap = max(mult, min(cap, n))
    d = (cap // mult) * mult
    while d >= mult:
        if n % d == 0:
            return d
        d -= mult
    return n   # no aligned divisor (e.g. n < mult): use the full dimension


# ----------------------------------------------------------------------------
# Kernel 1: average-pool downsample of a (H, W) grayscale target by `factor`.
# Grid iterates over independent row-blocks of the *output* ("parallel").
# Row pooling is done first with layout-benign VPU adds; the lane-splitting
# reshape for column pooling then only sees factor× less data.
# ----------------------------------------------------------------------------
def _avg_pool_kernel(x_ref, o_ref, *, factor):
    x = x_ref[...].astype(jnp.float32)               # (bo*f, W)
    bof, w = x.shape
    bo = bof // factor
    wo = w // factor
    # Row (sublane-group) pooling: pure adds across row groups.
    xr = x.reshape(bo, factor, w).sum(axis=1)        # (bo, W)
    # Column (lane-group) pooling.
    # TODO(synk): for very large W this could be an MXU matmul with a static
    # (W, Wo) averaging matrix to avoid the lane-splitting reshape entirely.
    out = xr.reshape(bo, wo, factor).sum(axis=2)     # (bo, Wo)
    o_ref[...] = (out * jnp.float32(1.0 / (factor * factor))).astype(o_ref.dtype)


def avg_pool_downsample_2d(x, factor):
    """Average-pool downsample of a (H, W) array by integer `factor`."""
    if factor == 1:
        return x
    H, W = x.shape
    assert H % factor == 0 and W % factor == 0
    Ho, Wo = H // factor, W // factor
    # Output-row block: largest divisor of Ho (multiple of 8 when possible)
    # whose (bo*factor, W) f32 input slab fits the per-buffer VMEM budget.
    in_row_bytes = 4 * factor * W
    bo_cap = max(8, _BLOCK_BUDGET_BYTES // max(in_row_bytes, 1))
    bo = _largest_divisor_block(Ho, 8, min(_MAX_ROW_BLOCK, bo_cap))
    nb = Ho // bo
    return pl.pallas_call(
        functools.partial(_avg_pool_kernel, factor=factor),
        out_shape=jax.ShapeDtypeStruct((Ho, Wo), x.dtype),
        grid=(nb,),
        in_specs=[pl.BlockSpec((bo * factor, W), lambda i: (i, 0))],
        out_specs=pl.BlockSpec((bo, Wo), lambda i: (i, 0)),
        compiler_params=pltpu.CompilerParams(
            dimension_semantics=("parallel",),
            vmem_limit_bytes=_VMEM_LIMIT_BYTES),
    )(x)


# ----------------------------------------------------------------------------
# Kernel 2: reduction loss (L1 / L2-MSE / Huber, mean reduction like torch).
# Two-stage reduction: each (independent, "parallel") grid step reads a large
# (bh, W) block, computes the per-element contribution, folds it down to a
# lane-dense (8, W) partial-sum block with pure VPU adds, and writes it out.
# The final scalar mean (tiny) is computed outside the kernel.
# ----------------------------------------------------------------------------
def _loss_partial_kernel(a_ref, b_ref, p_ref, *, loss_type, sub):
    d = a_ref[...].astype(jnp.float32) - b_ref[...].astype(jnp.float32)
    if loss_type == "L2":            # torch.nn.MSELoss()
        contrib = d * d
    elif loss_type == "L1":          # torch.nn.L1Loss()
        contrib = jnp.abs(d)
    elif loss_type == "Huber":       # torch.nn.HuberLoss(), delta=1.0
        ad = jnp.abs(d)
        contrib = jnp.where(ad < 1.0, 0.5 * d * d, ad - 0.5)
    else:
        raise ValueError(f"Invalid loss_fn_str: {loss_type}")

    bh, w = contrib.shape
    if sub == 1:
        # Fallback path (block height not a multiple of 8): single reduce.
        p_ref[...] = jnp.sum(contrib, axis=0, keepdims=True)
    else:
        # Fold row groups with element-wise VPU adds; no cross-lane work here.
        p_ref[...] = contrib.reshape(bh // sub, sub, w).sum(axis=0)


def make_loss_fn(loss_type="L2"):
    if loss_type not in ("L1", "L2", "Huber"):
        raise KeyError(loss_type)

    def loss(pred, target):
        assert pred.shape == target.shape and pred.ndim == 2
        H, W = pred.shape
        # Row block: largest divisor of H (multiple of 8) whose double-buffered
        # footprint (2 inputs x 2 buffers x bh x W x 4B) stays within budget.
        row_bytes = 4 * W
        bh_cap = max(8, _BLOCK_BUDGET_BYTES // max(row_bytes, 1))
        bh = _largest_divisor_block(H, 8, min(_MAX_ROW_BLOCK, bh_cap))
        sub = 8 if bh % 8 == 0 else 1
        nb = H // bh
        partial = pl.pallas_call(
            functools.partial(_loss_partial_kernel, loss_type=loss_type,
                              sub=sub),
            out_shape=jax.ShapeDtypeStruct((nb * sub, W), jnp.float32),
            grid=(nb,),
            in_specs=[pl.BlockSpec((bh, W), lambda i: (i, 0)),
                      pl.BlockSpec((bh, W), lambda i: (i, 0))],
            out_specs=pl.BlockSpec((sub, W), lambda i: (i, 0)),
            compiler_params=pltpu.CompilerParams(
                dimension_semantics=("parallel",),
                vmem_limit_bytes=_VMEM_LIMIT_BYTES),
        )(pred, target)
        # Stage 2: tiny reduction + mean outside the kernel; keeps the grid
        # axis "parallel" so v7x can shard blocks across both TensorCores.
        return jnp.sum(partial) * jnp.float32(1.0 / (H * W))

    return loss


# ----------------------------------------------------------------------------
# BaseTNModel equivalent (JAX / Pallas).
# ----------------------------------------------------------------------------
class BaseTNModelPallas:
    def __init__(self, target, init_reso, max_rank=256, dtype="float32",
                 loss_fn_str="L2", payload=0, payload_position="grayscale",
                 regularization_type="TV", dimensions=2, noisy_target=None,
                 masked_avg_pooling=False, sigma_init=0):
        self.tn = None
        self.target = target
        self.noisy_target = noisy_target
        self.init_reso = init_reso
        self.current_reso = init_reso
        self.payload = payload
        self.payload_position = payload_position
        self.dimensions = dimensions
        self.max_rank = max_rank
        self.grayscale = payload_position == "grayscale"
        self.regularization_type = regularization_type
        self.masked_avg_pooling = masked_avg_pooling
        self.sigma_init = sigma_init
        # TODO(synk): TPUs have no native float64; without jax x64 enabled the
        # "float64" option silently runs in float32.
        self.dtype = jnp.float32 if dtype == "float32" else jnp.float64

        self.grid_size = [init_reso for _ in range(self.dimensions)]
        if self.payload_position != "grayscale" and self.payload != 0:
            self.grid_size.append(self.payload)
        print(f"payload: {self.payload}, grid_size: {self.grid_size}, "
              f"device: {jax.devices()[0]}")

        downscale_factor = int(self.target.shape[1] / self.current_reso)
        self.downsampled_target = self.downsample_target(
            factor=downscale_factor, grayscale=self.grayscale,
            dim=self.dimensions, masked_avg_pooling=self.masked_avg_pooling)
        self.downsampled_target_non_noise = self.downsample_target(
            factor=downscale_factor, grayscale=self.grayscale,
            dim=self.dimensions, use_non_noisy_target=True)

        self.num_trainable_params = 0
        self.flops_per_iter = []
        self.largest_intermediate_per_iter = []
        self.compression_factor = None
        self.loss_fn = self.get_loss_fn(loss_fn_str)

    # --- downsampling ------------------------------------------------------
    def downsample_target(self, factor=2, grayscale=True, dim=2,
                          downsample_method="avg_pooling",
                          use_non_noisy_target=False,
                          masked_avg_pooling=False):
        if self.noisy_target is not None and (not use_non_noisy_target):
            target_tmp = self.noisy_target
            print("Using noisy target")
        else:
            target_tmp = self.target
        if downsample_method != "avg_pooling":
            # TODO(synk): wavelet / lanczos downsampling not ported.
            raise ValueError("only avg_pooling is implemented")
        if dim != 2 or not grayscale or masked_avg_pooling:
            # TODO(synk): 3D / payload-channel / masked avg pooling paths not ported.
            raise NotImplementedError
        return avg_pool_downsample_2d(
            target_tmp.astype(jnp.float32), factor).astype(self.dtype)

    # --- loss --------------------------------------------------------------
    def get_loss_fn(self, loss_fn_str):
        return make_loss_fn(loss_fn_str)   # raises KeyError like the torch dict

    def regularization(self):
        regularization_actions = {"None": lambda: 0.0,
                                  "TV": lambda: getattr(self, "reg_term", 0.0),
                                  "L1": lambda: 0.0,   # TODO(synk): needs self.tn cores
                                  "L2": lambda: 0.0}   # TODO(synk): needs self.tn cores
        return regularization_actions[self.regularization_type]()

    # --- coordinate gather (indexing glue, plain JAX) ----------------------
    def get_values_for_coords(self, tensor, coords):
        ndim = coords.shape[1]
        if ndim < 2 or ndim > 3:
            raise ValueError(f"Invalid number of dimensions for coords: {ndim}")
        if self.grayscale:
            if ndim == 2:
                return tensor[coords[:, 0], coords[:, 1]]
            return tensor[coords[:, 0], coords[:, 1], coords[:, 2]]
        if ndim == 2:
            return tensor[coords[:, 0], coords[:, 1], :]
        return tensor[coords[:, 0], coords[:, 1], coords[:, 2], :]

    # --- forward ------------------------------------------------------------
    def forward(self, x, x_norm=None):
        # The reference BaseTNModel.forward is `pass` (abstract); subclasses
        # contract the tensor network.  Nothing to compute here.
        return None


# ----------------------------------------------------------------------------
if __name__ == "__main__":
    key = jax.random.PRNGKey(0)
    k_t, k_r, k_a, k_b = jax.random.split(key, 4)

    # --- small grayscale 2D target, init_reso -> downscale factor 2 --------
    H = W = 16
    init_reso = 8
    target = jax.random.uniform(k_t, (H, W), dtype=jnp.float32)

    model = BaseTNModelPallas(target, init_reso, loss_fn_str="L2",
                              payload=0, payload_position="grayscale",
                              dimensions=2)

    ds = jax.block_until_ready(model.downsampled_target)        # (8, 8)

    # Reference check: avg-pool downsample (exact f32 path).
    ds_ref = target.reshape(init_reso, 2, init_reso, 2).mean(axis=(1, 3))
    assert ds.shape == (init_reso, init_reso)
    assert jnp.allclose(ds, ds_ref, atol=1e-6), "avg-pool mismatch"

    # Reference check: MSE loss kernel against a synthetic reconstruction.
    recon = jax.random.uniform(k_r, (init_reso, init_reso), dtype=jnp.float32)
    loss = jax.block_until_ready(model.loss_fn(recon, ds))
    loss_ref = jnp.mean((recon - ds) ** 2)
    assert jnp.allclose(loss, loss_ref, atol=1e-6), "MSE mismatch (small)"

    # --- larger arrays to exercise the multi-block "parallel" grid ----------
    Hb, Wb = 1024, 256          # -> bh = 512, 2 grid blocks
    a_big = jax.random.uniform(k_a, (Hb, Wb), dtype=jnp.float32)
    b_big = jax.random.uniform(k_b, (Hb, Wb), dtype=jnp.float32)

    l2 = jax.block_until_ready(make_loss_fn("L2")(a_big, b_big))
    l2_ref = jnp.mean((a_big - b_big) ** 2)
    assert jnp.allclose(l2, l2_ref, rtol=1e-5, atol=1e-6), "MSE mismatch (big)"

    l1 = jax.block_until_ready(make_loss_fn("L1")(a_big, b_big))
    l1_ref = jnp.mean(jnp.abs(a_big - b_big))
    assert jnp.allclose(l1, l1_ref, rtol=1e-5, atol=1e-6), "L1 mismatch"

    dd = a_big - b_big
    hu = jax.block_until_ready(make_loss_fn("Huber")(a_big, b_big))
    hu_ref = jnp.mean(jnp.where(jnp.abs(dd) < 1.0, 0.5 * dd * dd,
                                jnp.abs(dd) - 0.5))
    assert jnp.allclose(hu, hu_ref, rtol=1e-5, atol=1e-6), "Huber mismatch"

    # Gather path (glue).
    coords = jnp.array([[0, 0], [3, 5], [7, 7]], dtype=jnp.int32)
    vals = jax.block_until_ready(model.get_values_for_coords(ds, coords))
    assert vals.shape == (3,)

    print("KERNEL_OK")
</pallas_src>

<mosaic_0001>
module attributes {stable_mosaic.version = 11 : i64} {
  func.func @_avg_pool_kernel(%arg0: i32, %arg1: memref<16x16xf32, #tpu.memory_space<vmem>>, %arg2: memref<8x8xf32, #tpu.memory_space<vmem>>) attributes {dimension_semantics = [#tpu.dimension_semantics<parallel>], iteration_bounds = array<i64: 1>, scalar_prefetch = 0 : i64, scratch_operands = 0 : i64, tpu.core_type = #tpu.core_type<tc>, window_params = [{transform_indices = @transform_0, window_bounds = array<i64: 16, 16>}, {transform_indices = @transform_1, window_bounds = array<i64: 8, 8>}]} {
    %c0 = arith.constant 0 : index
    %c0_0 = arith.constant 0 : index
    %0 = vector.load %arg1[%c0, %c0_0] : memref<16x16xf32, #tpu.memory_space<vmem>>, vector<16x16xf32>
    %1 = vector.shape_cast %0 : vector<16x16xf32> to vector<8x2x16xf32>
    %cst = arith.constant dense<0.000000e+00> : vector<8x16xf32>
    %2 = vector.multi_reduction <add>, %1, %cst [1] : vector<8x2x16xf32> to vector<8x16xf32>
    %3 = vector.shape_cast %2 : vector<8x16xf32> to vector<8x8x2xf32>
    %cst_1 = arith.constant dense<0.000000e+00> : vector<8x8xf32>
    %4 = vector.multi_reduction <add>, %3, %cst_1 [2] : vector<8x8x2xf32> to vector<8x8xf32>
    %cst_2 = arith.constant 2.500000e-01 : f32
    %5 = vector.broadcast %cst_2 : f32 to vector<8x8xf32>
    %6 = arith.mulf %4, %5 : vector<8x8xf32>
    %c0_3 = arith.constant 0 : index
    %c0_4 = arith.constant 0 : index
    %7 = vector.load %arg2[%c0_3, %c0_4] : memref<8x8xf32, #tpu.memory_space<vmem>>, vector<8x8xf32>
    tpu.vector_store %arg2[%c0_3, %c0_4], %6 {strides = array<i32>} : memref<8x8xf32, #tpu.memory_space<vmem>>, vector<8x8xf32>,
    return
  }
  func.func @transform_0(%arg0: i32) -> (i32, i32) {
    %c0_i32 = arith.constant 0 : i32
    %c0_i32_0 = arith.constant 0 : i32
    return %arg0, %c0_i32 : i32, i32
  }
  func.func @transform_1(%arg0: i32) -> (i32, i32) {
    %c0_i32 = arith.constant 0 : i32
    %c0_i32_0 = arith.constant 0 : i32
    return %arg0, %c0_i32 : i32, i32
  }
}

</mosaic_0001>

<llo_original>
// kernel: tpu_custom_call.1
$region0: #{tpu_custom_call.1}
  #allocation0 [shape = 'u32[]', space=smem, size = 0x4, offset = 0x4, fixed_abs, tag = 'smem constant byte address 0x4 - core index']
  #allocation1 [shape = 'u32[72,128]{1,0:T(1,128)}', space=vmem, size = 0x9000, scoped, tag = 'internal scratch']
  %s0 = inlined_call_operand.hbm [shape: f32[16,16], index: 0, kind: input, shape index: {}]
  %s1 = inlined_call_operand.hbm [shape: f32[8,8], index: 1, kind: output, shape index: {}]
  %s2 = sld [smem:[#allocation0]]
  $region18: #{tpu_custom_call.1} parent=0
    _
  %s4 = ssub.s32 1, %s2
  %s5 = scalar_select 0, %s4, %s2
  $region1: #{tpu_custom_call.1} parent=0
    #allocation2 [shape = 'u8[8192]{0}', space=vmem, size = 0x2000, scoped, tag = 'input window, operand 0, single buffered']
    #allocation3 [shape = 's32[1]{0}', space=sflag, size = 0x4, scoped, tag = 'scoped memory for tpu_custom_call.1']
    #allocation4 [shape = 's32[1]{0}', space=sflag, size = 0x4, scoped, tag = 'scoped memory for tpu_custom_call.1']
    #allocation5 [shape = 'u8[4096]{0}', space=vmem, size = 0x1000, scoped, tag = 'output window, operand 0, single buffered']
    %6 = vsyncpa [#allocation3], 0
    %7 = vsyncpa [#allocation4], 0
    // Predicated region
    $region2: #{tpu_custom_call.1} parent=1 // pred_check
      _
    $region3: #{tpu_custom_call.1} parent=1 // pred_check_branch
      %9 = sbr.rel (0) target = $region5
    $region4: #{tpu_custom_call.1} parent=1 // pred_region
      %11 = vsyncadd [#allocation3], 0
      %s12 = sshll.u32 %s0, 4
      %s13 = int_to_ptr.hbm [resolvable:$true] %s12
      %s14 = sshll.u32 [#allocation2], 4
      %s15 = int_to_ptr.vmem [resolvable:$true] %s14
      %20 = dma.hbm_to_vmem [thread:$0]  %s13, 256, %s15, [#allocation3], 128, 128, 8
    $region5: #{tpu_custom_call.1} parent=1 // pred_fallthru
      _
    // Predicated region
    $region6: #{tpu_custom_call.1} parent=1 // pred_check
      _
    $region7: #{tpu_custom_call.1} parent=1 // pred_check_branch
      %22 = sbr.rel (0) target = $region9
    $region8: #{tpu_custom_call.1} parent=1 // pred_region
      %24 = dma.done [#allocation3], 256
    $region9: #{tpu_custom_call.1} parent=1 // pred_fallthru
      _
    %v25 = vld [vmem:[#allocation2] sm:$0xff]
    %v26 = vld [vmem:[#allocation2 + $0x8] sm:$0xff]
    %v29 = vrot.slane %v25, 2
    %v30 = vrot.slane %v25, 4
    %v31 = vrot.slane %v25, 6
    %v32 = vrot.slane %v26, 2
    %v33 = vrot.slane %v26, 4
    %v34 = vrot.slane %v26, 6
    %vm41 = vcmask 123904
    %v42 = vsel %vm41, %v25, 0.0
    %v43 = vrot.slane %v42, 4
    %v44 = vadd.f32 %v42, %v43
    %v45 = vrot.slane %v44, 2
    %v46 = vadd.f32 %v44, %v45
    %v47 = vrot.slane %v46, 1
    %v48 = vadd.f32 %v46, %v47
    %v49 = vsel %vm41, %v29, 0.0
    %v50 = vrot.slane %v49, 4
    %v51 = vadd.f32 %v49, %v50
    %v52 = vrot.slane %v51, 2
    %v53 = vadd.f32 %v51, %v52
    %v54 = vrot.slane %v53, 1
    %v55 = vadd.f32 %v53, %v54
    %v56 = vsel %vm41, %v30, 0.0
    %v57 = vrot.slane %v56, 4
    %v58 = vadd.f32 %v56, %v57
    %v59 = vrot.slane %v58, 2
    %v60 = vadd.f32 %v58, %v59
    %v61 = vrot.slane %v60, 1
    %v62 = vadd.f32 %v60, %v61
    %v63 = vsel %vm41, %v31, 0.0
    %v64 = vrot.slane %v63, 4
    %v65 = vadd.f32 %v63, %v64
    %v66 = vrot.slane %v65, 2
    %v67 = vadd.f32 %v65, %v66
    %v68 = vrot.slane %v67, 1
    %v69 = vadd.f32 %v67, %v68
    %v70 = vsel %vm41, %v26, 0.0
    %v71 = vrot.slane %v70, 4
    %v72 = vadd.f32 %v70, %v71
    %v73 = vrot.slane %v72, 2
    %v74 = vadd.f32 %v72, %v73
    %v75 = vrot.slane %v74, 1
    %v76 = vadd.f32 %v74, %v75
    %v77 = vsel %vm41, %v32, 0.0
    %v78 = vrot.slane %v77, 4
    %v79 = vadd.f32 %v77, %v78
    %v80 = vrot.slane %v79, 2
    %v81 = vadd.f32 %v79, %v80
    %v82 = vrot.slane %v81, 1
    %v83 = vadd.f32 %v81, %v82
    %v84 = vsel %vm41, %v33, 0.0
    %v85 = vrot.slane %v84, 4
    %v86 = vadd.f32 %v84, %v85
    %v87 = vrot.slane %v86, 2
    %v88 = vadd.f32 %v86, %v87
    %v89 = vrot.slane %v88, 1
    %v90 = vadd.f32 %v88, %v89
    %v91 = vsel %vm41, %v34, 0.0
    %v92 = vrot.slane %v91, 4
    %v93 = vadd.f32 %v91, %v92
    %v94 = vrot.slane %v93, 2
    %v95 = vadd.f32 %v93, %v94
    %v96 = vrot.slane %v95, 1
    %v97 = vadd.f32 %v95, %v96
    %106 = vrot.lane.b32.xlu0 %v48, 126
    %v107 = vpop.permute.xlu0 %106
    %108 = vrot.lane.b32.xlu0 %v55, 126
    %v109 = vpop.permute.xlu0 %108
    %110 = vrot.lane.b32.xlu0 %v62, 126
    %v111 = vpop.permute.xlu0 %110
    %112 = vrot.lane.b32.xlu0 %v69, 126
    %v113 = vpop.permute.xlu0 %112
    %114 = vrot.lane.b32.xlu0 %v76, 126
    %v115 = vpop.permute.xlu0 %114
    %116 = vrot.lane.b32.xlu0 %v83, 126
    %v117 = vpop.permute.xlu0 %116
    %118 = vrot.lane.b32.xlu0 %v90, 126
    %v119 = vpop.permute.xlu0 %118
    %120 = vrot.lane.b32.xlu0 %v97, 126
    %v121 = vpop.permute.xlu0 %120
    %122 = vrot.lane.b32.xlu0 %v48, 124
    %v123 = vpop.permute.xlu0 %122
    %124 = vrot.lane.b32.xlu0 %v55, 124
    %v125 = vpop.permute.xlu0 %124
    %126 = vrot.lane.b32.xlu0 %v62, 124
    %v127 = vpop.permute.xlu0 %126
    %128 = vrot.lane.b32.xlu0 %v69, 124
    %v129 = vpop.permute.xlu0 %128
    %130 = vrot.lane.b32.xlu0 %v76, 124
    %v131 = vpop.permute.xlu0 %130
    %132 = vrot.lane.b32.xlu0 %v83, 124
    %v133 = vpop.permute.xlu0 %132
    %134 = vrot.lane.b32.xlu0 %v90, 124
    %v135 = vpop.permute.xlu0 %134
    %136 = vrot.lane.b32.xlu0 %v97, 124
    %v137 = vpop.permute.xlu0 %136
    %138 = vrot.lane.b32.xlu0 %v48, 122
    %v139 = vpop.permute.xlu0 %138
    %140 = vrot.lane.b32.xlu0 %v55, 122
    %v141 = vpop.permute.xlu0 %140
    %142 = vrot.lane.b32.xlu0 %v62, 122
    %v143 = vpop.permute.xlu0 %142
    %144 = vrot.lane.b32.xlu0 %v69, 122
    %v145 = vpop.permute.xlu0 %144
    %146 = vrot.lane.b32.xlu0 %v76, 122
    %v147 = vpop.permute.xlu0 %146
    %148 = vrot.lane.b32.xlu0 %v83, 122
    %v149 = vpop.permute.xlu0 %148
    %150 = vrot.lane.b32.xlu0 %v90, 122
    %v151 = vpop.permute.xlu0 %150
    %152 = vrot.lane.b32.xlu0 %v97, 122
    %v153 = vpop.permute.xlu0 %152
    %154 = vrot.lane.b32.xlu0 %v48, 120
    %v155 = vpop.permute.xlu0 %154
    %156 = vrot.lane.b32.xlu0 %v55, 120
    %v157 = vpop.permute.xlu0 %156
    %158 = vrot.lane.b32.xlu0 %v62, 120
    %v159 = vpop.permute.xlu0 %158
    %160 = vrot.lane.b32.xlu0 %v69, 120
    %v161 = vpop.permute.xlu0 %160
    %162 = vrot.lane.b32.xlu0 %v76, 120
    %v163 = vpop.permute.xlu0 %162
    %164 = vrot.lane.b32.xlu0 %v83, 120
    %v165 = vpop.permute.xlu0 %164
    %166 = vrot.lane.b32.xlu0 %v90, 120
    %v167 = vpop.permute.xlu0 %166
    %168 = vrot.lane.b32.xlu0 %v97, 120
    %v169 = vpop.permute.xlu0 %168
    %170 = vrot.lane.b32.xlu0 %v48, 118
    %v171 = vpop.permute.xlu0 %170
    %172 = vrot.lane.b32.xlu0 %v55, 118
    %v173 = vpop.permute.xlu0 %172
    %174 = vrot.lane.b32.xlu0 %v62, 118
    %v175 = vpop.permute.xlu0 %174
    %176 = vrot.lane.b32.xlu0 %v69, 118
    %v177 = vpop.permute.xlu0 %176
    %178 = vrot.lane.b32.xlu0 %v76, 118
    %v179 = vpop.permute.xlu0 %178
    %180 = vrot.lane.b32.xlu0 %v83, 118
    %v181 = vpop.permute.xlu0 %180
    %182 = vrot.lane.b32.xlu0 %v90, 118
    %v183 = vpop.permute.xlu0 %182
    %184 = vrot.lane.b32.xlu0 %v97, 118
    %v185 = vpop.permute.xlu0 %184
    %186 = vrot.lane.b32.xlu0 %v48, 116
    %v187 = vpop.permute.xlu0 %186
    %188 = vrot.lane.b32.xlu0 %v55, 116
    %v189 = vpop.permute.xlu0 %188
    %190 = vrot.lane.b32.xlu0 %v62, 116
    %v191 = vpop.permute.xlu0 %190
    %192 = vrot.lane.b32.xlu0 %v69, 116
    %v193 = vpop.permute.xlu0 %192
    %194 = vrot.lane.b32.xlu0 %v76, 116
    %v195 = vpop.permute.xlu0 %194
    %196 = vrot.lane.b32.xlu0 %v83, 116
    %v197 = vpop.permute.xlu0 %196
    %198 = vrot.lane.b32.xlu0 %v90, 116
    %v199 = vpop.permute.xlu0 %198
    %200 = vrot.lane.b32.xlu0 %v97, 116
    %v201 = vpop.permute.xlu0 %200
    %202 = vrot.lane.b32.xlu0 %v48, 114
    %v203 = vpop.permute.xlu0 %202
    %204 = vrot.lane.b32.xlu0 %v55, 114
    %v205 = vpop.permute.xlu0 %204
    %206 = vrot.lane.b32.xlu0 %v62, 114
    %v207 = vpop.permute.xlu0 %206
    %208 = vrot.lane.b32.xlu0 %v69, 114
    %v209 = vpop.permute.xlu0 %208
    %210 = vrot.lane.b32.xlu0 %v76, 114
    %v211 = vpop.permute.xlu0 %210
    %212 = vrot.lane.b32.xlu0 %v83, 114
    %v213 = vpop.permute.xlu0 %212
    %214 = vrot.lane.b32.xlu0 %v90, 114
    %v215 = vpop.permute.xlu0 %214
    %216 = vrot.lane.b32.xlu0 %v97, 114
    %v217 = vpop.permute.xlu0 %216
    %v218 = vrot.slane %v55, 7
    %vm219 = vcmask 1041409
    %v220 = vsel %vm219, %v218, %v48
    %v221 = vrot.slane %v62, 6
    %vm222 = vcmask 1042434
    %v223 = vsel %vm222, %v221, %v220
    %v224 = vrot.slane %v69, 5
    %vm225 = vcmask 1043459
    %v226 = vsel %vm225, %v224, %v223
    %v227 = vrot.slane %v76, 4
    %vm228 = vcmask 1044484
    %v229 = vsel %vm228, %v227, %v226
    %v230 = vrot.slane %v83, 3
    %vm231 = vcmask 1045509
    %v232 = vsel %vm231, %v230, %v229
    %v233 = vrot.slane %v90, 2
    %vm234 = vcmask 1046534
    %v235 = vsel %vm234, %v233, %v232
    %v236 = vrot.slane %v97, 1
    %vm237 = vcmask 1047559
    %v238 = vsel %vm237, %v236, %v235
    %v239 = vrot.slane %v109, 7
    %v240 = vsel %vm219, %v239, %v107
    %v241 = vrot.slane %v111, 6
    %v242 = vsel %vm222, %v241, %v240
    %v243 = vrot.slane %v113, 5
    %v244 = vsel %vm225, %v243, %v242
    %v245 = vrot.slane %v115, 4
    %v246 = vsel %vm228, %v245, %v244
    %v247 = vrot.slane %v117, 3
    %v248 = vsel %vm231, %v247, %v246
    %v249 = vrot.slane %v119, 2
    %v250 = vsel %vm234, %v249, %v248
    %v251 = vrot.slane %v121, 1
    %v252 = vsel %vm237, %v251, %v250
    %v253 = vrot.slane %v125, 7
    %v254 = vsel %vm219, %v253, %v123
    %v255 = vrot.slane %v127, 6
    %v256 = vsel %vm222, %v255, %v254
    %v257 = vrot.slane %v129, 5
    %v258 = vsel %vm225, %v257, %v256
    %v259 = vrot.slane %v131, 4
    %v260 = vsel %vm228, %v259, %v258
    %v261 = vrot.slane %v133, 3
    %v262 = vsel %vm231, %v261, %v260
    %v263 = vrot.slane %v135, 2
    %v264 = vsel %vm234, %v263, %v262
    %v265 = vrot.slane %v137, 1
    %v266 = vsel %vm237, %v265, %v264
    %v267 = vrot.slane %v141, 7
    %v268 = vsel %vm219, %v267, %v139
    %v269 = vrot.slane %v143, 6
    %v270 = vsel %vm222, %v269, %v268
    %v271 = vrot.slane %v145, 5
    %v272 = vsel %vm225, %v271, %v270
    %v273 = vrot.slane %v147, 4
    %v274 = vsel %vm228, %v273, %v272
    %v275 = vrot.slane %v149, 3
    %v276 = vsel %vm231, %v275, %v274
    %v277 = vrot.slane %v151, 2
    %v278 = vsel %vm234, %v277, %v276
    %v279 = vrot.slane %v153, 1
    %v280 = vsel %vm237, %v279, %v278
    %v281 = vrot.slane %v157, 7
    %v282 = vsel %vm219, %v281, %v155
    %v283 = vrot.slane %v159, 6
    %v284 = vsel %vm222, %v283, %v282
    %v285 = vrot.slane %v161, 5
    %v286 = vsel %vm225, %v285, %v284
    %v287 = vrot.slane %v163, 4
    %v288 = vsel %vm228, %v287, %v286
    %v289 = vrot.slane %v165, 3
    %v290 = vsel %vm231, %v289, %v288
    %v291 = vrot.slane %v167, 2
    %v292 = vsel %vm234, %v291, %v290
    %v293 = vrot.slane %v169, 1
    %v294 = vsel %vm237, %v293, %v292
    %v295 = vrot.slane %v173, 7
    %v296 = vsel %vm219, %v295, %v171
    %v297 = vrot.slane %v175, 6
    %v298 = vsel %vm222, %v297, %v296
    %v299 = vrot.slane %v177, 5
    %v300 = vsel %vm225, %v299, %v298
    %v301 = vrot.slane %v179, 4
    %v302 = vsel %vm228, %v301, %v300
    %v303 = vrot.slane %v181, 3
    %v304 = vsel %vm231, %v303, %v302
    %v305 = vrot.slane %v183, 2
    %v306 = vsel %vm234, %v305, %v304
    %v307 = vrot.slane %v185, 1
    %v308 = vsel %vm237, %v307, %v306
    %v309 = vrot.slane %v189, 7
    %v310 = vsel %vm219, %v309, %v187
    %v311 = vrot.slane %v191, 6
    %v312 = vsel %vm222, %v311, %v310
    %v313 = vrot.slane %v193, 5
    %v314 = vsel %vm225, %v313, %v312
    %v315 = vrot.slane %v195, 4
    %v316 = vsel %vm228, %v315, %v314
    %v317 = vrot.slane %v197, 3
    %v318 = vsel %vm231, %v317, %v316
    %v319 = vrot.slane %v199, 2
    %v320 = vsel %vm234, %v319, %v318
    %v321 = vrot.slane %v201, 1
    %v322 = vsel %vm237, %v321, %v320
    %v323 = vrot.slane %v205, 7
    %v324 = vsel %vm219, %v323, %v203
    %v325 = vrot.slane %v207, 6
    %v326 = vsel %vm222, %v325, %v324
    %v327 = vrot.slane %v209, 5
    %v328 = vsel %vm225, %v327, %v326
    %v329 = vrot.slane %v211, 4
    %v330 = vsel %vm228, %v329, %v328
    %v331 = vrot.slane %v213, 3
    %v332 = vsel %vm231, %v331, %v330
    %v333 = vrot.slane %v215, 2
    %v334 = vsel %vm234, %v333, %v332
    %v335 = vrot.slane %v217, 1
    %v336 = vsel %vm237, %v335, %v334
    %v345 = vrot.slane %v266, 4
    %vm346 = vcmask 1047556
    %v347 = vsel %vm346, %v345, %v238
    %v348 = vrot.slane %v238, 4
    %v349 = vsel %vm346, %v266, %v348
    %v351 = vunpack.c.l.s4 1983009808
    %v352 = vunpack.c.0.s8 %v351
    %v353 = vperm.slane %v347, %v352
    %v355 = vunpack.c.l.s4 1983009808
    %v356 = vunpack.c.0.s8 %v355
    %v357 = vperm.slane %v349, %v356
    %v358 = vrot.slane %v280, 4
    %v359 = vsel %vm346, %v358, %v252
    %v360 = vrot.slane %v252, 4
    %v361 = vsel %vm346, %v280, %v360
    %v363 = vunpack.c.l.s4 1983009808
    %v364 = vunpack.c.0.s8 %v363
    %v365 = vperm.slane %v359, %v364
    %v367 = vunpack.c.l.s4 1983009808
    %v368 = vunpack.c.0.s8 %v367
    %v369 = vperm.slane %v361, %v368
    %v370 = vrot.slane %v322, 4
    %v371 = vsel %vm346, %v370, %v294
    %v372 = vrot.slane %v294, 4
    %v373 = vsel %vm346, %v322, %v372
    %v375 = vunpack.c.l.s4 1983009808
    %v376 = vunpack.c.0.s8 %v375
    %v377 = vperm.slane %v371, %v376
    %v379 = vunpack.c.l.s4 1983009808
    %v380 = vunpack.c.0.s8 %v379
    %v381 = vperm.slane %v373, %v380
    %v382 = vrot.slane %v336, 4
    %v383 = vsel %vm346, %v382, %v308
    %v384 = vrot.slane %v308, 4
    %v385 = vsel %vm346, %v336, %v384
    %v387 = vunpack.c.l.s4 1983009808
    %v388 = vunpack.c.0.s8 %v387
    %v389 = vperm.slane %v383, %v388
    %v391 = vunpack.c.l.s4 1983009808
    %v392 = vunpack.c.0.s8 %v391
    %v393 = vperm.slane %v385, %v392
    %v394 = vrot.slane %v365, 4
    %v395 = vsel %vm346, %v394, %v353
    %v396 = vrot.slane %v353, 4
    %v397 = vsel %vm346, %v365, %v396
    %v399 = vunpack.c.l.s4 1934713408
    %v400 = vunpack.c.0.s8 %v399
    %v401 = vperm.slane %v395, %v400
    %v403 = vunpack.c.l.s4 1934713408
    %v404 = vunpack.c.0.s8 %v403
    %v405 = vperm.slane %v397, %v404
    %v406 = vrot.slane %v369, 4
    %v407 = vsel %vm346, %v406, %v357
    %v408 = vrot.slane %v357, 4
    %v409 = vsel %vm346, %v369, %v408
    %v411 = vunpack.c.l.s4 1934713408
    %v412 = vunpack.c.0.s8 %v411
    %v413 = vperm.slane %v407, %v412
    %v415 = vunpack.c.l.s4 1934713408
    %v416 = vunpack.c.0.s8 %v415
    %v417 = vperm.slane %v409, %v416
    %v418 = vrot.slane %v389, 4
    %v419 = vsel %vm346, %v418, %v377
    %v420 = vrot.slane %v377, 4
    %v421 = vsel %vm346, %v389, %v420
    %v423 = vunpack.c.l.s4 1934713408
    %v424 = vunpack.c.0.s8 %v423
    %v425 = vperm.slane %v419, %v424
    %v427 = vunpack.c.l.s4 1934713408
    %v428 = vunpack.c.0.s8 %v427
    %v429 = vperm.slane %v421, %v428
    %v430 = vrot.slane %v393, 4
    %v431 = vsel %vm346, %v430, %v381
    %v432 = vrot.slane %v381, 4
    %v433 = vsel %vm346, %v393, %v432
    %v435 = vunpack.c.l.s4 1934713408
    %v436 = vunpack.c.0.s8 %v435
    %v437 = vperm.slane %v431, %v436
    %v439 = vunpack.c.l.s4 1934713408
    %v440 = vunpack.c.0.s8 %v439
    %v441 = vperm.slane %v433, %v440
    %v442 = vrot.slane %v425, 4
    %v443 = vsel %vm346, %v442, %v401
    %v444 = vrot.slane %v401, 4
    %v445 = vsel %vm346, %v425, %v444
    %v446 = vrot.slane %v429, 4
    %v447 = vsel %vm346, %v446, %v405
    %v448 = vrot.slane %v405, 4
    %v449 = vsel %vm346, %v429, %v448
    %v450 = vrot.slane %v437, 4
    %v451 = vsel %vm346, %v450, %v413
    %v452 = vrot.slane %v413, 4
    %v453 = vsel %vm346, %v437, %v452
    %v454 = vrot.slane %v441, 4
    %v455 = vsel %vm346, %v454, %v417
    %v456 = vrot.slane %v417, 4
    %v457 = vsel %vm346, %v441, %v456
    %vm458 = vcmask 15360
    %v459 = vsel %vm458, %v443, 0.0
    %460 = vadd.xlane.f32.xlu0 %v459
    %v461 = vpop.xlane.xlu0 %460
    %v462 = vsel %vm458, %v445, 0.0
    %463 = vadd.xlane.f32.xlu0 %v462
    %v464 = vpop.xlane.xlu0 %463
    %v465 = vsel %vm458, %v447, 0.0
    %466 = vadd.xlane.f32.xlu0 %v465
    %v467 = vpop.xlane.xlu0 %466
    %v468 = vsel %vm458, %v449, 0.0
    %469 = vadd.xlane.f32.xlu0 %v468
    %v470 = vpop.xlane.xlu0 %469
    %v471 = vsel %vm458, %v451, 0.0
    %472 = vadd.xlane.f32.xlu0 %v471
    %v473 = vpop.xlane.xlu0 %472
    %v474 = vsel %vm458, %v453, 0.0
    %475 = vadd.xlane.f32.xlu0 %v474
    %v476 = vpop.xlane.xlu0 %475
    %v477 = vsel %vm458, %v455, 0.0
    %478 = vadd.xlane.f32.xlu0 %v477
    %v479 = vpop.xlane.xlu0 %478
    %v480 = vsel %vm458, %v457, 0.0
    %481 = vadd.xlane.f32.xlu0 %v480
    %v482 = vpop.xlane.xlu0 %481
    %v483 = vmul.f32 %v461, 0.25
    %v484 = vmul.f32 %v464, 0.25
    %v485 = vmul.f32 %v467, 0.25
    %v486 = vmul.f32 %v470, 0.25
    %v487 = vmul.f32 %v473, 0.25
    %v488 = vmul.f32 %v476, 0.25
    %v489 = vmul.f32 %v479, 0.25
    %v490 = vmul.f32 %v482, 0.25
    %v499 = vlaneseq
    %v500 = vand.u32 %v499, 127
    %v501 = vperm.slane %v483, %v500
    %v502 = vperm.slane %v484, %v500
    %v503 = vperm.slane %v485, %v500
    %v504 = vperm.slane %v486, %v500
    %v505 = vperm.slane %v487, %v500
    %v506 = vperm.slane %v488, %v500
    %v507 = vperm.slane %v489, %v500
    %v508 = vperm.slane %v490, %v500
    %v509 = vsel %vm219, %v502, %v501
    %v510 = vsel %vm222, %v503, %v509
    %v511 = vsel %vm225, %v504, %v510
    %v512 = vsel %vm228, %v505, %v511
    %v513 = vsel %vm231, %v506, %v512
    %v514 = vsel %vm234, %v507, %v513
    %v515 = vsel %vm237, %v508, %v514
    %vm517 = vcmask 64512
    %518 = vst.msk [vmem:[#allocation5] sm:$0xff] %vm517, %v515
    // Predicated region
    $region10: #{tpu_custom_call.1} parent=1 // pred_check
      _
    $region11: #{tpu_custom_call.1} parent=1 // pred_check_branch
      %520 = sbr.rel (0) target = $region13
    $region12: #{tpu_custom_call.1} parent=1 // pred_region
      %522 = vsyncadd [#allocation4], 0
      %s524 = sshll.u32 [#allocation5], 4
      %s525 = int_to_ptr.vmem [resolvable:$true] %s524
      %s526 = sshll.u32 %s1, 4
      %s527 = int_to_ptr.hbm [resolvable:$true] %s526
      %529 = dma.vmem_to_hbm [thread:$0]  %s525, 128, %s527, [#allocation4]
    $region13: #{tpu_custom_call.1} parent=1 // pred_fallthru
      _
    // Predicated region
    $region14: #{tpu_custom_call.1} parent=1 // pred_check
      _
    $region15: #{tpu_custom_call.1} parent=1 // pred_check_branch
      %531 = sbr.rel (0) target = $region17
    $region16: #{tpu_custom_call.1} parent=1 // pred_region
      %533 = dma.done [#allocation4], 128
    $region17: #{tpu_custom_call.1} parent=1 // pred_fallthru
      _
    %534 = vsyncpa [#allocation3], 1
    %535 = vsyncpa [#allocation4], 1

</llo_original>
